<compile_context>
chip_gen: v6e
topology: v6e:2x2x1
jax: 0.10.0
libtpu: 0.0.40
codegen_flags: <defaults>
</compile_context>

<pallas_src>
from math import sqrt

import jax
import jax.numpy as jnp
from jax.experimental import pallas as pl
from jax.experimental.pallas import tpu as pltpu


# ----------------------------------------------------------------------------- 
# Kernel
# -----------------------------------------------------------------------------
def _equalized_linear_kernel(c: float):
    """y = (x @ w_t) * c + b, accumulated directly into the resident f32 o_ref."""

    def kernel(x_ref, w_ref, b_ref, o_ref):
        # x_ref: (tm, tk), w_ref: (tk, tn)  [weight pre-transposed to (In, Out)]
        # b_ref: (1, tn),  o_ref: (tm, tn) f32, resident across the K axis.
        k = pl.program_id(2)

        @pl.when(k == 0)
        def _init():
            o_ref[...] = jnp.zeros_like(o_ref)

        # Canonical MXU contraction: (tm, tk) @ (tk, tn), f32 accumulate.
        o_ref[...] += jnp.dot(
            x_ref[...], w_ref[...], preferred_element_type=jnp.float32
        )

        @pl.when(k == pl.num_programs(2) - 1)
        def _finalize():
            # Equalized-lr scale + bias applied exactly once on the small tile.
            o_ref[...] = o_ref[...] * c + b_ref[...]

    return kernel


# ----------------------------------------------------------------------------- 
# Tiling / VMEM budgeting
# -----------------------------------------------------------------------------
def _vmem_capacity_bytes() -> int:
    """Physical VMEM per TensorCore (128 MiB v5e/v6e, 64 MiB v7x); safe fallback."""
    try:
        info = pltpu.get_tpu_info()
        cap = getattr(info, "vmem_capacity_bytes", None)
        if cap:
            return int(cap)
    except Exception:
        pass
    return 64 * 1024 * 1024  # conservative: works on every generation


def _divisor_options(dim: int, candidates) -> list:
    """Candidates (descending) that evenly divide `dim`; full extent if none.

    The full-extent fallback is always *correct*; for very large awkward dims
    it can produce an oversized single block (see budget check below).
    """
    opts = [t for t in candidates if dim >= t and dim % t == 0]
    return opts if opts else [dim]


def _footprint_bytes(tm, tn, tk, x_bytes, w_bytes) -> int:
    x_buf = 2 * tm * tk * x_bytes      # double-buffered x tile
    w_buf = 2 * tk * tn * w_bytes      # double-buffered weight tile
    b_buf = 2 * tn * 4                 # bias tile (negligible)
    o_buf = 2 * tm * tn * 4            # f32 output tile (also the accumulator)
    return x_buf + w_buf + b_buf + o_buf


def _pick_tiles(batch, out_f, in_f, x_bytes, w_bytes, budget, min_tm):
    """Greedy: grow tk first, then tn, then tm, under the VMEM budget."""
    tk_opts = _divisor_options(in_f, (2048, 1536, 1024, 768, 512, 384, 256, 128))
    tn_opts = _divisor_options(out_f, (2048, 1536, 1024, 768, 512, 384, 256, 128))
    tm_cands = [t for t in (512, 384, 256, 128, 64, 32, 16, 8) if t >= min_tm]
    tm_opts = _divisor_options(batch, tuple(tm_cands))

    for tk in tk_opts:
        for tn in tn_opts:
            for tm in tm_opts:
                if _footprint_bytes(tm, tn, tk, x_bytes, w_bytes) <= budget:
                    return tm, tn, tk
    # Smallest legal combo (may exceed budget only for huge non-divisible dims).
    return tm_opts[-1], tn_opts[-1], tk_opts[-1]


def _ensure_parallel_work(tm, tn, batch, out_f, min_tm):
    """Make sure the two 'parallel' grid axes expose >= 2 programs when possible
    (keeps the second TensorCore busy on v7x)."""
    if (batch // tm) * (out_f // tn) >= 2:
        return tm, tn
    half_tn = tn // 2
    if half_tn >= 128 and half_tn % 128 == 0 and out_f % half_tn == 0:
        return tm, half_tn
    half_tm = tm // 2
    if half_tm >= min_tm and batch % half_tm == 0:
        return half_tm, tn
    return tm, tn


# ----------------------------------------------------------------------------- 
# Wrapper
# -----------------------------------------------------------------------------
def prepare_equalized_linear_params(weight, bias, *, compute_dtype=jnp.float32):
    """One-time parameter prep (do this at init in real use, NOT per forward):
    cast weight to the MXU operand dtype and transpose to (In, Out)."""
    out_features, in_features = weight.shape
    assert bias.shape == (out_features,)
    c = 1.0 / sqrt(float(in_features))
    w_t = weight.astype(compute_dtype).T              # (In, Out)
    bias2d = bias.reshape(1, out_features).astype(jnp.float32)
    return w_t, bias2d, c


def equalized_linear_prepared(x, w_t, bias2d, c, *, compute_dtype=jnp.float32):
    """EqualizedLinear forward with pre-prepared params.

    x:      (batch, in_features)
    w_t:    (in_features, out_features)   pre-cast, pre-transposed weight
    bias2d: (1, out_features)             f32
    c:      equalized-lr scale 1/sqrt(in_features)
    """
    batch, in_features = x.shape
    in_features_w, out_features = w_t.shape
    assert in_features == in_features_w

    x_c = x.astype(compute_dtype)
    x_bytes = jnp.dtype(compute_dtype).itemsize
    w_bytes = jnp.dtype(w_t.dtype).itemsize
    min_tm = 16 if x_bytes < 4 else 8  # bf16 packs two rows per sublane

    capacity = _vmem_capacity_bytes()
    # ~40 MiB on v7x (64 MiB physical), capped at 48 MiB on v5e/v6e (128 MiB).
    budget = min(capacity * 5 // 8, 48 * 1024 * 1024)

    tm, tn, tk = _pick_tiles(batch, out_features, in_features,
                             x_bytes, w_bytes, budget, min_tm)
    tm, tn = _ensure_parallel_work(tm, tn, batch, out_features, min_tm)

    vmem_limit = int(min(capacity, budget + (8 * 1024 * 1024)))
    grid = (batch // tm, out_features // tn, in_features // tk)

    # NOTE: if the weight DMA shows up exposed in a profile after tile growth
    # (most likely on v7x), sweep pipeline_mode=pl.Buffered(3) on the weight spec.
    return pl.pallas_call(
        _equalized_linear_kernel(c),
        out_shape=jax.ShapeDtypeStruct((batch, out_features), jnp.float32),
        grid_spec=pltpu.PrefetchScalarGridSpec(
            num_scalar_prefetch=0,
            grid=grid,
            in_specs=[
                pl.BlockSpec((tm, tk), lambda i, j, k: (i, k)),   # x
                pl.BlockSpec((tk, tn), lambda i, j, k: (k, j)),   # weight.T (In, Out)
                pl.BlockSpec((1, tn), lambda i, j, k: (0, j)),    # bias
            ],
            out_specs=pl.BlockSpec((tm, tn), lambda i, j, k: (i, j)),
        ),
        compiler_params=pltpu.CompilerParams(
            dimension_semantics=("parallel", "parallel", "arbitrary"),
            vmem_limit_bytes=vmem_limit,
        ),
    )(x_c, w_t, bias2d)


def equalized_linear(x, weight, bias, *, compute_dtype=jnp.float32):
    """Convenience entry point matching the PyTorch module signature.

    x: (batch, in), weight: (out, in) un-scaled parameter, bias: (out,).
    Real deployments should call prepare_equalized_linear_params once and reuse
    the prepared (w_t, bias2d, c) across forward calls.
    """
    w_t, bias2d, c = prepare_equalized_linear_params(
        weight, bias, compute_dtype=compute_dtype
    )
    return equalized_linear_prepared(x, w_t, bias2d, c, compute_dtype=compute_dtype)


# ----------------------------------------------------------------------------- 
# Self-check
# -----------------------------------------------------------------------------
if __name__ == "__main__":
    key = jax.random.PRNGKey(0)

    # --- Test 1: tiny shape (single tile, grid (1,1,1)), f32 + bf16 paths ----
    batch, in_features, out_features = 8, 32, 16
    k_x, k_w, key = (*jax.random.split(key, 2), key)
    x = jax.random.normal(k_x, (batch, in_features), dtype=jnp.float32)
    weight = jax.random.normal(k_w, (out_features, in_features), dtype=jnp.float32)
    bias = jnp.zeros((out_features,), dtype=jnp.float32)

    c = 1.0 / sqrt(float(in_features))
    y_ref = x @ (weight * c).T + bias

    y = jax.block_until_ready(equalized_linear(x, weight, bias))
    assert y.shape == (batch, out_features)
    assert jnp.allclose(y, y_ref, atol=1e-5, rtol=1e-5)

    y_bf16 = jax.block_until_ready(
        equalized_linear(x, weight, bias, compute_dtype=jnp.bfloat16)
    )
    assert y_bf16.shape == (batch, out_features)
    assert jnp.allclose(y_bf16, y_ref, atol=5e-2, rtol=5e-2)

    # --- Test 2: multi-step K reduction + megacore tn split, f32 -------------
    batch2, in2, out2 = 16, 4096, 256
    k_x2, k_w2 = jax.random.split(jax.random.PRNGKey(1))
    x2 = jax.random.normal(k_x2, (batch2, in2), dtype=jnp.float32)
    w2 = jax.random.normal(k_w2, (out2, in2), dtype=jnp.float32)
    b2 = jnp.full((out2,), 0.1, dtype=jnp.float32)

    c2 = 1.0 / sqrt(float(in2))
    y2_ref = x2 @ (w2 * c2).T + b2

    w2_t, b2_2d, c2p = prepare_equalized_linear_params(w2, b2)
    y2 = jax.block_until_ready(equalized_linear_prepared(x2, w2_t, b2_2d, c2p))
    assert y2.shape == (batch2, out2)
    assert jnp.allclose(y2, y2_ref, atol=2e-4, rtol=2e-4)

    print("KERNEL_OK")
</pallas_src>

<mosaic_0001>
module attributes {stable_mosaic.version = 11 : i64} {
  func.func @kernel(%arg0: i32, %arg1: i32, %arg2: i32, %arg3: memref<8x32xf32, #tpu.memory_space<vmem>>, %arg4: memref<32x16xf32, #tpu.memory_space<vmem>>, %arg5: memref<1x16xf32, #tpu.memory_space<vmem>>, %arg6: memref<8x16xf32, #tpu.memory_space<vmem>>) attributes {dimension_semantics = [#tpu.dimension_semantics<parallel>, #tpu.dimension_semantics<parallel>, #tpu.dimension_semantics<arbitrary>], iteration_bounds = array<i64: 1, 1, 1>, scalar_prefetch = 0 : i64, scratch_operands = 0 : i64, tpu.core_type = #tpu.core_type<tc>, window_params = [{transform_indices = @transform_0, window_bounds = array<i64: 8, 32>}, {transform_indices = @transform_1, window_bounds = array<i64: 32, 16>}, {transform_indices = @transform_2, window_bounds = array<i64: 1, 16>}, {transform_indices = @transform_3, window_bounds = array<i64: 8, 16>}]} {
    %c0_i32 = arith.constant 0 : i32
    %0 = arith.cmpi eq, %arg2, %c0_i32 : i32
    %1 = arith.extui %0 : i1 to i32
    %c0_i32_0 = arith.constant 0 : i32
    %2 = arith.cmpi ne, %1, %c0_i32_0 : i32
    scf.if %2 {
      %cst_10 = arith.constant 0.000000e+00 : f32
      %12 = vector.broadcast %cst_10 : f32 to vector<8x16xf32>
      %c0_11 = arith.constant 0 : index
      %c0_12 = arith.constant 0 : index
      %13 = vector.load %arg6[%c0_11, %c0_12] : memref<8x16xf32, #tpu.memory_space<vmem>>, vector<8x16xf32>
      tpu.vector_store %arg6[%c0_11, %c0_12], %12 {strides = array<i32>} : memref<8x16xf32, #tpu.memory_space<vmem>>, vector<8x16xf32>,
    } else {
    }
    %c0 = arith.constant 0 : index
    %c0_1 = arith.constant 0 : index
    %3 = vector.load %arg6[%c0, %c0_1] : memref<8x16xf32, #tpu.memory_space<vmem>>, vector<8x16xf32>
    %c0_2 = arith.constant 0 : index
    %c0_3 = arith.constant 0 : index
    %4 = vector.load %arg3[%c0_2, %c0_3] : memref<8x32xf32, #tpu.memory_space<vmem>>, vector<8x32xf32>
    %c0_4 = arith.constant 0 : index
    %c0_5 = arith.constant 0 : index
    %5 = vector.load %arg4[%c0_4, %c0_5] : memref<32x16xf32, #tpu.memory_space<vmem>>, vector<32x16xf32>
    %cst = arith.constant dense<0.000000e+00> : vector<8x16xf32>
    %6 = tpu.matmul %4, %5, %cst {dimension_numbers = #tpu.dot_dimension_numbers<[1], [0], [0], [1], [0, 0, 1, 1], [], []>} : vector<8x32xf32>, vector<32x16xf32>, vector<8x16xf32> -> vector<8x16xf32>
    %7 = arith.addf %3, %6 : vector<8x16xf32>
    %c0_6 = arith.constant 0 : index
    %c0_7 = arith.constant 0 : index
    %8 = vector.load %arg6[%c0_6, %c0_7] : memref<8x16xf32, #tpu.memory_space<vmem>>, vector<8x16xf32>
    tpu.vector_store %arg6[%c0_6, %c0_7], %7 {strides = array<i32>} : memref<8x16xf32, #tpu.memory_space<vmem>>, vector<8x16xf32>,
    %c0_i32_8 = arith.constant 0 : i32
    %9 = arith.cmpi eq, %arg2, %c0_i32_8 : i32
    %10 = arith.extui %9 : i1 to i32
    %c0_i32_9 = arith.constant 0 : i32
    %11 = arith.cmpi ne, %10, %c0_i32_9 : i32
    scf.if %11 {
      %c0_10 = arith.constant 0 : index
      %c0_11 = arith.constant 0 : index
      %12 = vector.load %arg6[%c0_10, %c0_11] : memref<8x16xf32, #tpu.memory_space<vmem>>, vector<8x16xf32>
      %cst_12 = arith.constant 0.176776692 : f32
      %13 = vector.broadcast %cst_12 : f32 to vector<8x16xf32>
      %14 = arith.mulf %12, %13 : vector<8x16xf32>
      %c0_13 = arith.constant 0 : index
      %c0_14 = arith.constant 0 : index
      %15 = vector.load %arg5[%c0_13, %c0_14] : memref<1x16xf32, #tpu.memory_space<vmem>>, vector<1x16xf32>
      %16 = vector.broadcast %15 : vector<1x16xf32> to vector<8x16xf32>
      %17 = arith.addf %14, %16 : vector<8x16xf32>
      %c0_15 = arith.constant 0 : index
      %c0_16 = arith.constant 0 : index
      %18 = vector.load %arg6[%c0_15, %c0_16] : memref<8x16xf32, #tpu.memory_space<vmem>>, vector<8x16xf32>
      tpu.vector_store %arg6[%c0_15, %c0_16], %17 {strides = array<i32>} : memref<8x16xf32, #tpu.memory_space<vmem>>, vector<8x16xf32>,
    } else {
    }
    return
  }
  func.func @transform_0(%arg0: i32, %arg1: i32, %arg2: i32) -> (i32, i32) {
    %c0_i32 = arith.constant 0 : i32
    return %arg0, %arg2 : i32, i32
  }
  func.func @transform_1(%arg0: i32, %arg1: i32, %arg2: i32) -> (i32, i32) {
    %c0_i32 = arith.constant 0 : i32
    return %arg2, %arg1 : i32, i32
  }
  func.func @transform_2(%arg0: i32, %arg1: i32, %arg2: i32) -> (i32, i32) {
    %c0_i32 = arith.constant 0 : i32
    %c0_i32_0 = arith.constant 0 : i32
    return %c0_i32, %arg1 : i32, i32
  }
  func.func @transform_3(%arg0: i32, %arg1: i32, %arg2: i32) -> (i32, i32) {
    %c0_i32 = arith.constant 0 : i32
    return %arg0, %arg1 : i32, i32
  }
}

</mosaic_0001>

<llo_original>
// kernel: tpu_custom_call.1
$region0: #{tpu_custom_call.1}
  #allocation0 [shape = 'u32[]', space=smem, size = 0x4, offset = 0x4, fixed_abs, tag = 'smem constant byte address 0x4 - core index']
  #allocation1 [shape = 'u32[144,128]{1,0:T(1,128)}', space=vmem, size = 0x12000, scoped, tag = 'internal scratch']
  %s0 = inlined_call_operand.vmem [shape: f32[8,32], index: 0, kind: input, shape index: {}]
  %s1 = inlined_call_operand.vmem [shape: f32[32,16], index: 1, kind: input, shape index: {}]
  %s2 = inlined_call_operand.vmem [shape: f32[1,16], index: 2, kind: input, shape index: {}]
  %s3 = inlined_call_operand.hbm [shape: f32[8,16], index: 3, kind: output, shape index: {}]
  %s4 = sld [smem:[#allocation0]]
  $region30: #{tpu_custom_call.1} parent=0
    _
  %s6 = ssub.s32 1, %s4
  %s7 = scalar_select 0, %s6, %s4
  $region1: #{tpu_custom_call.1} parent=0
    #allocation2 [shape = 'u8[4096]{0}', space=vmem, size = 0x1000, scoped, tag = 'output window, operand 0, single buffered']
    #allocation3 [shape = 's32[1]{0}', space=sflag, size = 0x4, scoped, tag = 'scoped memory for tpu_custom_call.1']
    %8 = vsyncpa [#allocation3], 0
    // Predicated region
    $region2: #{tpu_custom_call.1} parent=1 // pred_check
      _
    $region3: #{tpu_custom_call.1} parent=1 // pred_check_branch
      %10 = sbr.rel (0) target = $region5
    $region4: #{tpu_custom_call.1} parent=1 // pred_region
      _
    $region5: #{tpu_custom_call.1} parent=1 // pred_fallthru
      _
    // Predicated region
    $region6: #{tpu_custom_call.1} parent=1 // pred_check
      _
    $region7: #{tpu_custom_call.1} parent=1 // pred_check_branch
      %12 = sbr.rel (0) target = $region9
    $region8: #{tpu_custom_call.1} parent=1 // pred_region
      _
    $region9: #{tpu_custom_call.1} parent=1 // pred_fallthru
      _
    // Predicated region
    $region10: #{tpu_custom_call.1} parent=1 // pred_check
      _
    $region11: #{tpu_custom_call.1} parent=1 // pred_check_branch
      %14 = sbr.rel (0) target = $region13
    $region12: #{tpu_custom_call.1} parent=1 // pred_region
      _
    $region13: #{tpu_custom_call.1} parent=1 // pred_fallthru
      _
    %p15 = scmp.eq.s32.totalorder 0, 0
    // Predicated region
    $region14: #{tpu_custom_call.1} parent=1 // pred_check
      %p16 = pneg %p15
    $region15: #{tpu_custom_call.1} parent=1 // pred_check_branch
      %18 = sbr.rel (%p16) target = $region17
    $region16: #{tpu_custom_call.1} parent=1 // pred_region
      %vm19 = vcmask 130048
      %20 = vst.msk [vmem:[#allocation2] sm:$0xff] %vm19, 0.0
    $region17: #{tpu_custom_call.1} parent=1 // pred_fallthru
      _
    %v21 = vld [vmem:[#allocation2] sm:$0xff]
    %v22 = vld [vmem:[%s0] sm:$0xff]
    %v23 = vld [vmem:[%s1] sm:$0xff]
    %v24 = vld [vmem:[%s1 + $0x8] sm:$0xff]
    %v25 = vld [vmem:[%s1 + $0x10] sm:$0xff]
    %v26 = vld [vmem:[%s1 + $0x18] sm:$0xff]
    %vm27 = vcmask 261120
    %v29 = vsel %vm27, %v22, 0
    %31 = vmatprep.subr.mxu0 0.0
    %32 = vmatpush1.msra.mxu0 0.0
    %33 = vmatprep.subr.mxu0 0.0
    %34 = vmatpush1.msra.mxu0 0.0
    %35 = vmatprep.subr.mxu0 0.0
    %36 = vmatpush1.msra.mxu0 0.0
    %37 = vmatprep.subr.mxu0 0.0
    %38 = vmatpush1.msra.mxu0 0.0
    %39 = vmatprep.subr.mxu0 0.0
    %40 = vmatpush1.msra.mxu0 0.0
    %41 = vmatprep.subr.mxu0 0.0
    %42 = vmatpush1.msra.mxu0 0.0
    %43 = vmatprep.subr.mxu0 0.0
    %44 = vmatpush1.msra.mxu0 0.0
    %45 = vmatprep.subr.mxu0 0.0
    %46 = vmatpush1.msra.mxu0 0.0
    %47 = vmatprep.subr.mxu0 0.0
    %48 = vmatpush1.msra.mxu0 0.0
    %49 = vmatprep.subr.mxu0 0.0
    %50 = vmatpush1.msra.mxu0 0.0
    %51 = vmatprep.subr.mxu0 0.0
    %52 = vmatpush1.msra.mxu0 0.0
    %53 = vmatprep.subr.mxu0 0.0
    %54 = vmatpush1.msra.mxu0 0.0
    %55 = vmatprep.subr.mxu0 0.0
    %56 = vmatpush1.msra.mxu0 %v26
    %57 = vmatprep.subr.mxu0 0.0
    %58 = vmatpush1.msra.mxu0 %v25
    %59 = vmatprep.subr.mxu0 0.0
    %60 = vmatpush1.msra.mxu0 %v24
    %61 = vmatprep.subr.mxu0 0.0
    %62 = vmatpush1.msra.mxu0 %v23
    %63 = vmatprep.subr.mxu0 0.0
    %64 = vmatpush2.msra.mxu0 0.0
    %65 = vmatprep.subr.mxu0 0.0
    %66 = vmatpush2.msra.mxu0 0.0
    %67 = vmatprep.subr.mxu0 0.0
    %68 = vmatpush2.msra.mxu0 0.0
    %69 = vmatprep.subr.mxu0 0.0
    %70 = vmatpush2.msra.mxu0 0.0
    %71 = vmatprep.subr.mxu0 0.0
    %72 = vmatpush2.msra.mxu0 0.0
    %73 = vmatprep.subr.mxu0 0.0
    %74 = vmatpush2.msra.mxu0 0.0
    %75 = vmatprep.subr.mxu0 0.0
    %76 = vmatpush2.msra.mxu0 0.0
    %77 = vmatprep.subr.mxu0 0.0
    %78 = vmatpush2.msra.mxu0 0.0
    %79 = vmatprep.subr.mxu0 0.0
    %80 = vmatpush2.msra.mxu0 0.0
    %81 = vmatprep.subr.mxu0 0.0
    %82 = vmatpush2.msra.mxu0 0.0
    %83 = vmatprep.subr.mxu0 0.0
    %84 = vmatpush2.msra.mxu0 0.0
    %85 = vmatprep.subr.mxu0 0.0
    %86 = vmatpush2.msra.mxu0 0.0
    %87 = vmatprep.subr.mxu0 0.0
    %88 = vmatpush2.msra.mxu0 0.0
    %89 = vmatprep.subr.mxu0 0.0
    %90 = vmatpush2.msra.mxu0 0.0
    %91 = vmatprep.subr.mxu0 0.0
    %92 = vmatpush2.msra.mxu0 0.0
    %93 = vmatprep.subr.mxu0 0.0
    %94 = vmatpush2.msra.mxu0 0.0
    %95 = vmatprep.mubr.f32.mxu0 0.0
    %96 = vmatmul.mubr.f32.gmra.mxu0 %v29
    %v97 = vpop.f32.mrf.mxu0
    %v98 = vadd.f32 0.0, %v97
    %v99 = vpop.f32.mrf.mxu0
    %100 = vdwg.mxu0
    %v101 = vadd.f32 %v21, %v98
    %vm102 = vcmask 130048
    %103 = vst.msk [vmem:[#allocation2] sm:$0xff] %vm102, %v101
    // Predicated region
    $region18: #{tpu_custom_call.1} parent=1 // pred_check
      %p104 = pneg %p15
    $region19: #{tpu_custom_call.1} parent=1 // pred_check_branch
      %106 = sbr.rel (%p104) target = $region21
    $region20: #{tpu_custom_call.1} parent=1 // pred_region
      %v107 = vld [vmem:[#allocation2] sm:$0xff]
      %v108 = vmul.f32 %v107, 0.17677669
      %v109 = vld [vmem:[%s2] sm:$0x1]
      %v111 = vlaneseq
      %v112 = vshrl.u32 %v111, 7
      %v113 = vsub.s32 0, %v112
      %v114 = vrot.slane %v109, %v113
      %v116 = vadd.f32 %v108, %v114
      %117 = vst.msk [vmem:[#allocation2] sm:$0xff] %vm102, %v116
    $region21: #{tpu_custom_call.1} parent=1 // pred_fallthru
      _
    // Predicated region
    $region22: #{tpu_custom_call.1} parent=1 // pred_check
      _
    $region23: #{tpu_custom_call.1} parent=1 // pred_check_branch
      %119 = sbr.rel (0) target = $region25
    $region24: #{tpu_custom_call.1} parent=1 // pred_region
      %s121 = ssub.s32 128, 128
      %122 = vsyncadd [#allocation3], %s121
      %s124 = sshll.u32 [#allocation2], 4
      %s125 = int_to_ptr.vmem [resolvable:$true] %s124
      %127 = dma.vmem_to_hbm [thread:$0]  %s125, 128, %s3, [#allocation3]
    $region25: #{tpu_custom_call.1} parent=1 // pred_fallthru
      _
    // Predicated region
    $region26: #{tpu_custom_call.1} parent=1 // pred_check
      _
    $region27: #{tpu_custom_call.1} parent=1 // pred_check_branch
      %129 = sbr.rel (0) target = $region29
    $region28: #{tpu_custom_call.1} parent=1 // pred_region
      %130 = dma.done [#allocation3], 128
    $region29: #{tpu_custom_call.1} parent=1 // pred_fallthru
      _
    %131 = vsyncpa [#allocation3], 1

</llo_original>
